<compile_context>
chip_gen: v6e
topology: v6e:2x2x1
jax: 0.10.0
libtpu: 0.0.40
codegen_flags: <defaults>
</compile_context>

<pallas_src>
import functools

import jax
import jax.numpy as jnp
from jax.experimental import pallas as pl
from jax.experimental.pallas import tpu as pltpu


def _round_up(x, m):
    return ((x + m - 1) // m) * m


def _pick_tile(total, candidates):
    for c in candidates:
        if total % c == 0:
            return c
    return total


def rnn_recurrence_kernel(xp_ref, h0_ref, whh_ref, y_ref, hN_ref, h_scratch,
                          *, seq_len, mask_tail):
    """One (batch_tile, seq_chunk) block of the tanh recurrence.

    xp_ref : (seq_chunk, bt, Hp) bf16  gathered input projection + fused biases
    h0_ref : (bt, Hp) f32              initial hidden state
    whh_ref: (Hp, Hp) bf16             W_hh^T
    y_ref  : (seq_chunk, bt, Hp) bf16  per-step hidden states (output)
    hN_ref : (bt, Hp) f32              final hidden state (resident across seq)
    h_scratch: (bt, Hp) f32 VMEM       carried hidden state across seq chunks
    """
    s = pl.program_id(1)
    seq_chunk = xp_ref.shape[0]

    @pl.when(s == 0)
    def _():
        h_scratch[...] = h0_ref[...]

    whh = whh_ref[...]                      # hoisted out of the time loop
    base_t = s * seq_chunk

    def step(t, h):
        # TODO(synk): stage W_hh^T in the MXU once per chunk via
        # pltpu.matmul_push_rhs / matmul_acc_lhs instead of re-pushing the
        # same RHS on every serial step.
        h_new = jnp.tanh(
            xp_ref[t].astype(jnp.float32)
            + jnp.dot(h.astype(jnp.bfloat16), whh,
                      preferred_element_type=jnp.float32))
        if mask_tail:
            # Seq-padding timesteps must not advance the carried state.
            h_new = jnp.where(base_t + t < seq_len, h_new, h)
        y_ref[t] = h_new.astype(y_ref.dtype)
        return h_new

    h_final = jax.lax.fori_loop(0, seq_chunk, step, h_scratch[...],
                                unroll=min(8, seq_chunk))
    h_scratch[...] = h_final
    hN_ref[...] = h_final                   # written back after last chunk


def dense_head_kernel(y_ref, wd_ref, bd_ref, out_ref):
    """(row_tile, Hp) @ (Hp, vocab_tile) MXU matmul + bias (lane-dense out)."""
    out_ref[...] = (
        jnp.dot(y_ref[...], wd_ref[...], preferred_element_type=jnp.float32)
        + bd_ref[...])


@functools.partial(jax.jit,
                   static_argnames=("vocab_size", "batch_tile", "seq_chunk"))
def rnn_model_forward(inputs, h0, params, vocab_size,
                      batch_tile=None, seq_chunk=None):
    """inputs: (batch, seq) int32; h0: (1, batch, hidden) f32.

    Returns (output, state) matching the PyTorch module:
      output: (seq*batch, vocab)   state: (1, batch, hidden)
    """
    batch, seq = inputs.shape
    hidden = h0.shape[-1]
    f32, bf16 = jnp.float32, jnp.bfloat16

    # ---- padded sizes: lane=128, sublane=8 (16 for strict bf16 sub-tiles) --
    Hp = _round_up(hidden, 128)
    Vp = _round_up(vocab_size, 128)
    Bp = _round_up(batch, 8)

    if batch_tile is None:
        # >=2 batch tiles when possible so v7x's 2nd TensorCore gets work.
        if Bp >= 32 and (Bp // 2) % 16 == 0:
            batch_tile = Bp // 2
        elif Bp >= 32:
            batch_tile = 16
        else:
            batch_tile = Bp
    assert Bp % batch_tile == 0
    assert batch_tile == Bp or batch_tile % 16 == 0

    if seq_chunk is None:
        seq_chunk = min(seq, 128)       # >=128 steps/chunk amortize grid cost
    Sp = _round_up(seq, seq_chunk)

    # ---- wrapper-side glue (cheap XLA ops) ---------------------------------
    wih_t = jnp.zeros((vocab_size, Hp), f32).at[:, :hidden].set(
        params["W_ih"].T)
    b_fused = jnp.zeros((Hp,), f32).at[:hidden].set(
        params["b_ih"] + params["b_hh"])
    whh_t = jnp.zeros((Hp, Hp), bf16).at[:hidden, :hidden].set(
        params["W_hh"].T.astype(bf16))
    wd_t = jnp.zeros((Hp, Vp), bf16).at[:hidden, :vocab_size].set(
        params["W_dense"].T.astype(bf16))
    bd = jnp.zeros((1, Vp), f32).at[0, :vocab_size].set(params["b_dense"])

    # one_hot(x) @ W_ih^T  ==  row gather of W_ih^T; fold both RNN biases in.
    ids = inputs.T.astype(jnp.int32)                       # (seq, batch)
    xp = (wih_t[ids] + b_fused).astype(bf16)               # (seq, batch, Hp)
    xp = jnp.pad(xp, ((0, Sp - seq), (0, Bp - batch), (0, 0)))
    h0p = jnp.pad(h0[0], ((0, Bp - batch), (0, Hp - hidden)))  # (Bp, Hp) f32

    # ---- kernel 1: seq-chunked, batch-tiled recurrence ---------------------
    n_bt = Bp // batch_tile
    n_sc = Sp // seq_chunk
    xp_blk = seq_chunk * batch_tile * Hp * 2                  # bf16 bytes
    rec_need = (2 * xp_blk                                    # xp (2 bufs)
                + 2 * xp_blk                                  # y  (2 bufs)
                + 2 * Hp * Hp * 2                             # W_hh^T
                + 5 * batch_tile * Hp * 4)                    # h0/hN/scratch
    rec_vmem = int(min(max(2 * rec_need, 16 << 20), 48 << 20))

    y, hN = pl.pallas_call(
        functools.partial(rnn_recurrence_kernel,
                          seq_len=seq, mask_tail=(Sp != seq)),
        out_shape=(jax.ShapeDtypeStruct((Sp, Bp, Hp), bf16),
                   jax.ShapeDtypeStruct((Bp, Hp), f32)),
        grid_spec=pltpu.PrefetchScalarGridSpec(
            num_scalar_prefetch=0,
            grid=(n_bt, n_sc),                       # seq chunks LAST
            in_specs=[
                pl.BlockSpec((seq_chunk, batch_tile, Hp),
                             lambda b, s: (s, b, 0)),
                pl.BlockSpec((batch_tile, Hp), lambda b, s: (b, 0)),
                pl.BlockSpec((Hp, Hp), lambda b, s: (0, 0)),
            ],
            out_specs=[
                pl.BlockSpec((seq_chunk, batch_tile, Hp),
                             lambda b, s: (s, b, 0)),
                pl.BlockSpec((batch_tile, Hp), lambda b, s: (b, 0)),
            ],
            scratch_shapes=[pltpu.VMEM((batch_tile, Hp), f32)],
        ),
        compiler_params=pltpu.CompilerParams(
            dimension_semantics=("parallel", "arbitrary"),
            vmem_limit_bytes=rec_vmem,
        ),
    )(xp, h0p, whh_t)

    # ---- kernel 2: tiled dense head (off the serial chain) -----------------
    rows = Sp * Bp
    row_tile = _pick_tile(rows, (512, 256, 128, 64, 32, 16))
    vocab_tile = _pick_tile(Vp, (1024, 512, 256, 128))
    dense_need = 2 * (row_tile * Hp * 2 + Hp * vocab_tile * 2
                      + vocab_tile * 4 + row_tile * vocab_tile * 4)
    dense_vmem = int(min(max(2 * dense_need, 16 << 20), 48 << 20))

    out_pad = pl.pallas_call(
        dense_head_kernel,
        out_shape=jax.ShapeDtypeStruct((rows, Vp), f32),
        grid_spec=pltpu.PrefetchScalarGridSpec(
            num_scalar_prefetch=0,
            grid=(rows // row_tile, Vp // vocab_tile),
            in_specs=[
                pl.BlockSpec((row_tile, Hp), lambda i, j: (i, 0)),
                pl.BlockSpec((Hp, vocab_tile), lambda i, j: (0, j)),
                pl.BlockSpec((1, vocab_tile), lambda i, j: (0, j)),
            ],
            out_specs=pl.BlockSpec((row_tile, vocab_tile),
                                   lambda i, j: (i, j)),
        ),
        compiler_params=pltpu.CompilerParams(
            dimension_semantics=("parallel", "parallel"),
            vmem_limit_bytes=dense_vmem,
        ),
    )(y.reshape(rows, Hp), wd_t, bd)

    # ---- strip padding; match the PyTorch output layout --------------------
    out = out_pad.reshape(Sp, Bp, Vp)[:seq, :batch, :vocab_size]
    out = out.reshape(seq * batch, vocab_size)
    state = hN[:batch, :hidden][None]                    # (1, batch, hidden)
    return out, state


def reference_forward(inputs, h0, params, vocab_size):
    """Pure-JAX reference mirroring the PyTorch forward (one-hot + nn.RNN)."""
    X = jax.nn.one_hot(inputs.T, vocab_size, dtype=jnp.float32)

    def step(h, x_t):
        h_new = jnp.tanh(x_t @ params["W_ih"].T + params["b_ih"]
                         + h @ params["W_hh"].T + params["b_hh"])
        return h_new, h_new

    h_last, Y = jax.lax.scan(step, h0[0], X)
    out = Y.reshape(-1, Y.shape[-1]) @ params["W_dense"].T + params["b_dense"]
    return out, h_last[None]


if __name__ == "__main__":
    # Small shapes consistent with the module: vocab=32, hidden=32, batch=2, seq=8.
    vocab_size = 32
    hidden = 32
    batch = 2
    seq = 8

    key = jax.random.PRNGKey(0)
    k_in, k_h0, k1, k2, k3, k4, k5, k6 = jax.random.split(key, 8)

    inputs = jax.random.randint(k_in, (batch, seq), 0, vocab_size,
                                dtype=jnp.int32)
    h0 = jax.random.normal(k_h0, (1, batch, hidden), dtype=jnp.float32)

    s = 0.1
    params = {
        "W_ih": s * jax.random.normal(k1, (hidden, vocab_size), jnp.float32),
        "W_hh": s * jax.random.normal(k2, (hidden, hidden), jnp.float32),
        "b_ih": s * jax.random.normal(k3, (hidden,), jnp.float32),
        "b_hh": s * jax.random.normal(k4, (hidden,), jnp.float32),
        "W_dense": s * jax.random.normal(k5, (vocab_size, hidden), jnp.float32),
        "b_dense": s * jax.random.normal(k6, (vocab_size,), jnp.float32),
    }

    out, state = rnn_model_forward(inputs, h0, params, vocab_size)
    out = jax.block_until_ready(out)
    state = jax.block_until_ready(state)

    ref_out, ref_state = reference_forward(inputs, h0, params, vocab_size)
    assert out.shape == (seq * batch, vocab_size), out.shape
    assert state.shape == (1, batch, hidden), state.shape
    # bf16 MXU operands with f32 accumulation -> loosened tolerance.
    assert jnp.allclose(out, ref_out, atol=2e-2, rtol=2e-2)
    assert jnp.allclose(state, ref_state, atol=2e-2, rtol=2e-2)

    print("KERNEL_OK")
</pallas_src>

<mosaic_0001>
module attributes {stable_mosaic.version = 11 : i64} {
  func.func @dense_head_kernel(%arg0: i32, %arg1: i32, %arg2: memref<64x128xbf16, #tpu.memory_space<vmem>>, %arg3: memref<128x128xbf16, #tpu.memory_space<vmem>>, %arg4: memref<1x128xf32, #tpu.memory_space<vmem>>, %arg5: memref<64x128xf32, #tpu.memory_space<vmem>>) attributes {dimension_semantics = [#tpu.dimension_semantics<parallel>, #tpu.dimension_semantics<parallel>], iteration_bounds = array<i64: 1, 1>, scalar_prefetch = 0 : i64, scratch_operands = 0 : i64, tpu.core_type = #tpu.core_type<tc>, window_params = [{transform_indices = @transform_0, window_bounds = array<i64: 64, 128>}, {transform_indices = @transform_1, window_bounds = array<i64: 128, 128>}, {transform_indices = @transform_2, window_bounds = array<i64: 1, 128>}, {transform_indices = @transform_3, window_bounds = array<i64: 64, 128>}]} {
    %c0 = arith.constant 0 : index
    %c0_0 = arith.constant 0 : index
    %0 = vector.load %arg2[%c0, %c0_0] : memref<64x128xbf16, #tpu.memory_space<vmem>>, vector<64x128xbf16>
    %c0_1 = arith.constant 0 : index
    %c0_2 = arith.constant 0 : index
    %1 = vector.load %arg3[%c0_1, %c0_2] : memref<128x128xbf16, #tpu.memory_space<vmem>>, vector<128x128xbf16>
    %cst = arith.constant dense<0.000000e+00> : vector<64x128xf32>
    %2 = tpu.matmul %0, %1, %cst {dimension_numbers = #tpu.dot_dimension_numbers<[1], [0], [0], [1], [0, 0, 1, 1], [], []>} : vector<64x128xbf16>, vector<128x128xbf16>, vector<64x128xf32> -> vector<64x128xf32>
    %c0_3 = arith.constant 0 : index
    %c0_4 = arith.constant 0 : index
    %3 = vector.load %arg4[%c0_3, %c0_4] : memref<1x128xf32, #tpu.memory_space<vmem>>, vector<1x128xf32>
    %4 = vector.broadcast %3 : vector<1x128xf32> to vector<64x128xf32>
    %5 = arith.addf %2, %4 : vector<64x128xf32>
    %c0_5 = arith.constant 0 : index
    %c0_6 = arith.constant 0 : index
    %6 = vector.load %arg5[%c0_5, %c0_6] : memref<64x128xf32, #tpu.memory_space<vmem>>, vector<64x128xf32>
    tpu.vector_store %arg5[%c0_5, %c0_6], %5 {strides = array<i32>} : memref<64x128xf32, #tpu.memory_space<vmem>>, vector<64x128xf32>,
    return
  }
  func.func @transform_0(%arg0: i32, %arg1: i32) -> (i32, i32) {
    %c0_i32 = arith.constant 0 : i32
    %c0_i32_0 = arith.constant 0 : i32
    return %arg0, %c0_i32 : i32, i32
  }
  func.func @transform_1(%arg0: i32, %arg1: i32) -> (i32, i32) {
    %c0_i32 = arith.constant 0 : i32
    %c0_i32_0 = arith.constant 0 : i32
    return %c0_i32, %arg1 : i32, i32
  }
  func.func @transform_2(%arg0: i32, %arg1: i32) -> (i32, i32) {
    %c0_i32 = arith.constant 0 : i32
    %c0_i32_0 = arith.constant 0 : i32
    return %c0_i32, %arg1 : i32, i32
  }
  func.func @transform_3(%arg0: i32, %arg1: i32) -> (i32, i32) {
    %c0_i32 = arith.constant 0 : i32
    return %arg0, %arg1 : i32, i32
  }
}

module attributes {stable_mosaic.version = 11 : i64} {
  func.func @rnn_recurrence_kernel(%arg0: i32, %arg1: i32, %arg2: memref<8x8x128xbf16, #tpu.memory_space<vmem>>, %arg3: memref<8x128xf32, #tpu.memory_space<vmem>>, %arg4: memref<128x128xbf16, #tpu.memory_space<vmem>>, %arg5: memref<8x8x128xbf16, #tpu.memory_space<vmem>>, %arg6: memref<8x128xf32, #tpu.memory_space<vmem>>, %arg7: memref<8x128xf32, #tpu.memory_space<vmem>>) attributes {dimension_semantics = [#tpu.dimension_semantics<parallel>, #tpu.dimension_semantics<arbitrary>], iteration_bounds = array<i64: 1, 1>, scalar_prefetch = 0 : i64, scratch_operands = 1 : i64, tpu.core_type = #tpu.core_type<tc>, window_params = [{transform_indices = @transform_0, window_bounds = array<i64: 8, 8, 128>}, {transform_indices = @transform_1, window_bounds = array<i64: 8, 128>}, {pipeline_mode = #tpu.pipeline_mode<synchronous>, transform_indices = @transform_2, window_bounds = array<i64: 128, 128>}, {transform_indices = @transform_3, window_bounds = array<i64: 8, 8, 128>}, {transform_indices = @transform_4, window_bounds = array<i64: 8, 128>}]} {
    %c0_i32 = arith.constant 0 : i32
    %0 = arith.cmpi eq, %arg1, %c0_i32 : i32
    %1 = arith.extui %0 : i1 to i32
    %c0_i32_0 = arith.constant 0 : i32
    %2 = arith.cmpi ne, %1, %c0_i32_0 : i32
    scf.if %2 {
      %c0_48 = arith.constant 0 : index
      %c0_49 = arith.constant 0 : index
      %111 = vector.load %arg3[%c0_48, %c0_49] : memref<8x128xf32, #tpu.memory_space<vmem>>, vector<8x128xf32>
      %c0_50 = arith.constant 0 : index
      %c0_51 = arith.constant 0 : index
      %112 = vector.load %arg7[%c0_50, %c0_51] : memref<8x128xf32, #tpu.memory_space<vmem>>, vector<8x128xf32>
      tpu.vector_store %arg7[%c0_50, %c0_51], %111 {strides = array<i32>} : memref<8x128xf32, #tpu.memory_space<vmem>>, vector<8x128xf32>,
    } else {
    }
    %c0 = arith.constant 0 : index
    %c0_1 = arith.constant 0 : index
    %3 = vector.load %arg4[%c0, %c0_1] : memref<128x128xbf16, #tpu.memory_space<vmem>>, vector<128x128xbf16>
    %c0_2 = arith.constant 0 : index
    %c0_3 = arith.constant 0 : index
    %4 = vector.load %arg7[%c0_2, %c0_3] : memref<8x128xf32, #tpu.memory_space<vmem>>, vector<8x128xf32>
    %c0_i32_4 = arith.constant 0 : i32
    %5 = arith.index_cast %c0_i32_4 : i32 to index
    %c0_5 = arith.constant 0 : index
    %c0_6 = arith.constant 0 : index
    %6 = vector.load %arg2[%5, %c0_5, %c0_6] : memref<8x8x128xbf16, #tpu.memory_space<vmem>>, vector<1x8x128xbf16>
    %7 = vector.shape_cast %6 : vector<1x8x128xbf16> to vector<8x128xbf16>
    %8 = arith.extf %7 : vector<8x128xbf16> to vector<8x128xf32>
    %9 = arith.truncf %4 : vector<8x128xf32> to vector<8x128xbf16>
    %cst = arith.constant dense<0.000000e+00> : vector<8x128xf32>
    %10 = tpu.matmul %9, %3, %cst {dimension_numbers = #tpu.dot_dimension_numbers<[1], [0], [0], [1], [0, 0, 1, 1], [], []>} : vector<8x128xbf16>, vector<128x128xbf16>, vector<8x128xf32> -> vector<8x128xf32>
    %11 = arith.addf %8, %10 : vector<8x128xf32>
    %12 = math.tanh %11 : vector<8x128xf32>
    %13 = arith.truncf %12 : vector<8x128xf32> to vector<8x128xbf16>
    %14 = arith.index_cast %c0_i32_4 : i32 to index
    %c0_7 = arith.constant 0 : index
    %c0_8 = arith.constant 0 : index
    %15 = vector.load %arg5[%14, %c0_7, %c0_8] : memref<8x8x128xbf16, #tpu.memory_space<vmem>>, vector<1x8x128xbf16>
    %16 = vector.shape_cast %15 : vector<1x8x128xbf16> to vector<8x128xbf16>
    %17 = vector.shape_cast %13 : vector<8x128xbf16> to vector<1x8x128xbf16>
    tpu.vector_store %arg5[%14, %c0_7, %c0_8], %17 {strides = array<i32>} : memref<8x8x128xbf16, #tpu.memory_space<vmem>>, vector<1x8x128xbf16>,
    %c1_i32 = arith.constant 1 : i32
    %18 = arith.index_cast %c1_i32 : i32 to index
    %c0_9 = arith.constant 0 : index
    %c0_10 = arith.constant 0 : index
    %19 = vector.load %arg2[%18, %c0_9, %c0_10] : memref<8x8x128xbf16, #tpu.memory_space<vmem>>, vector<1x8x128xbf16>
    %20 = vector.shape_cast %19 : vector<1x8x128xbf16> to vector<8x128xbf16>
    %21 = arith.extf %20 : vector<8x128xbf16> to vector<8x128xf32>
    %22 = arith.truncf %12 : vector<8x128xf32> to vector<8x128xbf16>
    %cst_11 = arith.constant dense<0.000000e+00> : vector<8x128xf32>
    %23 = tpu.matmul %22, %3, %cst_11 {dimension_numbers = #tpu.dot_dimension_numbers<[1], [0], [0], [1], [0, 0, 1, 1], [], []>} : vector<8x128xbf16>, vector<128x128xbf16>, vector<8x128xf32> -> vector<8x128xf32>
    %24 = arith.addf %21, %23 : vector<8x128xf32>
    %25 = math.tanh %24 : vector<8x128xf32>
    %26 = arith.truncf %25 : vector<8x128xf32> to vector<8x128xbf16>
    %27 = arith.index_cast %c1_i32 : i32 to index
    %c0_12 = arith.constant 0 : index
    %c0_13 = arith.constant 0 : index
    %28 = vector.load %arg5[%27, %c0_12, %c0_13] : memref<8x8x128xbf16, #tpu.memory_space<vmem>>, vector<1x8x128xbf16>
    %29 = vector.shape_cast %28 : vector<1x8x128xbf16> to vector<8x128xbf16>
    %30 = vector.shape_cast %26 : vector<8x128xbf16> to vector<1x8x128xbf16>
    tpu.vector_store %arg5[%27, %c0_12, %c0_13], %30 {strides = array<i32>} : memref<8x8x128xbf16, #tpu.memory_space<vmem>>, vector<1x8x128xbf16>,
    %c2_i32 = arith.constant 2 : i32
    %31 = arith.index_cast %c2_i32 : i32 to index
    %c0_14 = arith.constant 0 : index
    %c0_15 = arith.constant 0 : index
    %32 = vector.load %arg2[%31, %c0_14, %c0_15] : memref<8x8x128xbf16, #tpu.memory_space<vmem>>, vector<1x8x128xbf16>
    %33 = vector.shape_cast %32 : vector<1x8x128xbf16> to vector<8x128xbf16>
    %34 = arith.extf %33 : vector<8x128xbf16> to vector<8x128xf32>
    %35 = arith.truncf %25 : vector<8x128xf32> to vector<8x128xbf16>
    %cst_16 = arith.constant dense<0.000000e+00> : vector<8x128xf32>
    %36 = tpu.matmul %35, %3, %cst_16 {dimension_numbers = #tpu.dot_dimension_numbers<[1], [0], [0], [1], [0, 0, 1, 1], [], []>} : vector<8x128xbf16>, vector<128x128xbf16>, vector<8x128xf32> -> vector<8x128xf32>
    %37 = arith.addf %34, %36 : vector<8x128xf32>
    %38 = math.tanh %37 : vector<8x128xf32>
    %39 = arith.truncf %38 : vector<8x128xf32> to vector<8x128xbf16>
    %40 = arith.index_cast %c2_i32 : i32 to index
    %c0_17 = arith.constant 0 : index
    %c0_18 = arith.constant 0 : index
    %41 = vector.load %arg5[%40, %c0_17, %c0_18] : memref<8x8x128xbf16, #tpu.memory_space<vmem>>, vector<1x8x128xbf16>
    %42 = vector.shape_cast %41 : vector<1x8x128xbf16> to vector<8x128xbf16>
    %43 = vector.shape_cast %39 : vector<8x128xbf16> to vector<1x8x128xbf16>
    tpu.vector_store %arg5[%40, %c0_17, %c0_18], %43 {strides = array<i32>} : memref<8x8x128xbf16, #tpu.memory_space<vmem>>, vector<1x8x128xbf16>,
    %c3_i32 = arith.constant 3 : i32
    %44 = arith.index_cast %c3_i32 : i32 to index
    %c0_19 = arith.constant 0 : index
    %c0_20 = arith.constant 0 : index
    %45 = vector.load %arg2[%44, %c0_19, %c0_20] : memref<8x8x128xbf16, #tpu.memory_space<vmem>>, vector<1x8x128xbf16>
    %46 = vector.shape_cast %45 : vector<1x8x128xbf16> to vector<8x128xbf16>
    %47 = arith.extf %46 : vector<8x128xbf16> to vector<8x128xf32>
    %48 = arith.truncf %38 : vector<8x128xf32> to vector<8x128xbf16>
    %cst_21 = arith.constant dense<0.000000e+00> : vector<8x128xf32>
    %49 = tpu.matmul %48, %3, %cst_21 {dimension_numbers = #tpu.dot_dimension_numbers<[1], [0], [0], [1], [0, 0, 1, 1], [], []>} : vector<8x128xbf16>, vector<128x128xbf16>, vector<8x128xf32> -> vector<8x128xf32>
    %50 = arith.addf %47, %49 : vector<8x128xf32>
    %51 = math.tanh %50 : vector<8x128xf32>
    %52 = arith.truncf %51 : vector<8x128xf32> to vector<8x128xbf16>
    %53 = arith.index_cast %c3_i32 : i32 to index
    %c0_22 = arith.constant 0 : index
    %c0_23 = arith.constant 0 : index
    %54 = vector.load %arg5[%53, %c0_22, %c0_23] : memref<8x8x128xbf16, #tpu.memory_space<vmem>>, vector<1x8x128xbf16>
    %55 = vector.shape_cast %54 : vector<1x8x128xbf16> to vector<8x128xbf16>
    %56 = vector.shape_cast %52 : vector<8x128xbf16> to vector<1x8x128xbf16>
    tpu.vector_store %arg5[%53, %c0_22, %c0_23], %56 {strides = array<i32>} : memref<8x8x128xbf16, #tpu.memory_space<vmem>>, vector<1x8x128xbf16>,
    %c4_i32 = arith.constant 4 : i32
    %57 = arith.index_cast %c4_i32 : i32 to index
    %c0_24 = arith.constant 0 : index
    %c0_25 = arith.constant 0 : index
    %58 = vector.load %arg2[%57, %c0_24, %c0_25] : memref<8x8x128xbf16, #tpu.memory_space<vmem>>, vector<1x8x128xbf16>
    %59 = vector.shape_cast %58 : vector<1x8x128xbf16> to vector<8x128xbf16>
    %60 = arith.extf %59 : vector<8x128xbf16> to vector<8x128xf32>
    %61 = arith.truncf %51 : vector<8x128xf32> to vector<8x128xbf16>
    %cst_26 = arith.constant dense<0.000000e+00> : vector<8x128xf32>
    %62 = tpu.matmul %61, %3, %cst_26 {dimension_numbers = #tpu.dot_dimension_numbers<[1], [0], [0], [1], [0, 0, 1, 1], [], []>} : vector<8x128xbf16>, vector<128x128xbf16>, vector<8x128xf32> -> vector<8x128xf32>
    %63 = arith.addf %60, %62 : vector<8x128xf32>
    %64 = math.tanh %63 : vector<8x128xf32>
    %65 = arith.truncf %64 : vector<8x128xf32> to vector<8x128xbf16>
    %66 = arith.index_cast %c4_i32 : i32 to index
    %c0_27 = arith.constant 0 : index
    %c0_28 = arith.constant 0 : index
    %67 = vector.load %arg5[%66, %c0_27, %c0_28] : memref<8x8x128xbf16, #tpu.memory_space<vmem>>, vector<1x8x128xbf16>
    %68 = vector.shape_cast %67 : vector<1x8x128xbf16> to vector<8x128xbf16>
    %69 = vector.shape_cast %65 : vector<8x128xbf16> to vector<1x8x128xbf16>
    tpu.vector_store %arg5[%66, %c0_27, %c0_28], %69 {strides = array<i32>} : memref<8x8x128xbf16, #tpu.memory_space<vmem>>, vector<1x8x128xbf16>,
    %c5_i32 = arith.constant 5 : i32
    %70 = arith.index_cast %c5_i32 : i32 to index
    %c0_29 = arith.constant 0 : index
    %c0_30 = arith.constant 0 : index
    %71 = vector.load %arg2[%70, %c0_29, %c0_30] : memref<8x8x128xbf16, #tpu.memory_space<vmem>>, vector<1x8x128xbf16>
    %72 = vector.shape_cast %71 : vector<1x8x128xbf16> to vector<8x128xbf16>
    %73 = arith.extf %72 : vector<8x128xbf16> to vector<8x128xf32>
    %74 = arith.truncf %64 : vector<8x128xf32> to vector<8x128xbf16>
    %cst_31 = arith.constant dense<0.000000e+00> : vector<8x128xf32>
    %75 = tpu.matmul %74, %3, %cst_31 {dimension_numbers = #tpu.dot_dimension_numbers<[1], [0], [0], [1], [0, 0, 1, 1], [], []>} : vector<8x128xbf16>, vector<128x128xbf16>, vector<8x128xf32> -> vector<8x128xf32>
    %76 = arith.addf %73, %75 : vector<8x128xf32>
    %77 = math.tanh %76 : vector<8x128xf32>
    %78 = arith.truncf %77 : vector<8x128xf32> to vector<8x128xbf16>
    %79 = arith.index_cast %c5_i32 : i32 to index
    %c0_32 = arith.constant 0 : index
    %c0_33 = arith.constant 0 : index
    %80 = vector.load %arg5[%79, %c0_32, %c0_33] : memref<8x8x128xbf16, #tpu.memory_space<vmem>>, vector<1x8x128xbf16>
    %81 = vector.shape_cast %80 : vector<1x8x128xbf16> to vector<8x128xbf16>
    %82 = vector.shape_cast %78 : vector<8x128xbf16> to vector<1x8x128xbf16>
    tpu.vector_store %arg5[%79, %c0_32, %c0_33], %82 {strides = array<i32>} : memref<8x8x128xbf16, #tpu.memory_space<vmem>>, vector<1x8x128xbf16>,
    %c6_i32 = arith.constant 6 : i32
    %83 = arith.index_cast %c6_i32 : i32 to index
    %c0_34 = arith.constant 0 : index
    %c0_35 = arith.constant 0 : index
    %84 = vector.load %arg2[%83, %c0_34, %c0_35] : memref<8x8x128xbf16, #tpu.memory_space<vmem>>, vector<1x8x128xbf16>
    %85 = vector.shape_cast %84 : vector<1x8x128xbf16> to vector<8x128xbf16>
    %86 = arith.extf %85 : vector<8x128xbf16> to vector<8x128xf32>
    %87 = arith.truncf %77 : vector<8x128xf32> to vector<8x128xbf16>
    %cst_36 = arith.constant dense<0.000000e+00> : vector<8x128xf32>
    %88 = tpu.matmul %87, %3, %cst_36 {dimension_numbers = #tpu.dot_dimension_numbers<[1], [0], [0], [1], [0, 0, 1, 1], [], []>} : vector<8x128xbf16>, vector<128x128xbf16>, vector<8x128xf32> -> vector<8x128xf32>
    %89 = arith.addf %86, %88 : vector<8x128xf32>
    %90 = math.tanh %89 : vector<8x128xf32>
    %91 = arith.truncf %90 : vector<8x128xf32> to vector<8x128xbf16>
    %92 = arith.index_cast %c6_i32 : i32 to index
    %c0_37 = arith.constant 0 : index
    %c0_38 = arith.constant 0 : index
    %93 = vector.load %arg5[%92, %c0_37, %c0_38] : memref<8x8x128xbf16, #tpu.memory_space<vmem>>, vector<1x8x128xbf16>
    %94 = vector.shape_cast %93 : vector<1x8x128xbf16> to vector<8x128xbf16>
    %95 = vector.shape_cast %91 : vector<8x128xbf16> to vector<1x8x128xbf16>
    tpu.vector_store %arg5[%92, %c0_37, %c0_38], %95 {strides = array<i32>} : memref<8x8x128xbf16, #tpu.memory_space<vmem>>, vector<1x8x128xbf16>,
    %c7_i32 = arith.constant 7 : i32
    %96 = arith.index_cast %c7_i32 : i32 to index
    %c0_39 = arith.constant 0 : index
    %c0_40 = arith.constant 0 : index
    %97 = vector.load %arg2[%96, %c0_39, %c0_40] : memref<8x8x128xbf16, #tpu.memory_space<vmem>>, vector<1x8x128xbf16>
    %98 = vector.shape_cast %97 : vector<1x8x128xbf16> to vector<8x128xbf16>
    %99 = arith.extf %98 : vector<8x128xbf16> to vector<8x128xf32>
    %100 = arith.truncf %90 : vector<8x128xf32> to vector<8x128xbf16>
    %cst_41 = arith.constant dense<0.000000e+00> : vector<8x128xf32>
    %101 = tpu.matmul %100, %3, %cst_41 {dimension_numbers = #tpu.dot_dimension_numbers<[1], [0], [0], [1], [0, 0, 1, 1], [], []>} : vector<8x128xbf16>, vector<128x128xbf16>, vector<8x128xf32> -> vector<8x128xf32>
    %102 = arith.addf %99, %101 : vector<8x128xf32>
    %103 = math.tanh %102 : vector<8x128xf32>
    %104 = arith.truncf %103 : vector<8x128xf32> to vector<8x128xbf16>
    %105 = arith.index_cast %c7_i32 : i32 to index
    %c0_42 = arith.constant 0 : index
    %c0_43 = arith.constant 0 : index
    %106 = vector.load %arg5[%105, %c0_42, %c0_43] : memref<8x8x128xbf16, #tpu.memory_space<vmem>>, vector<1x8x128xbf16>
    %107 = vector.shape_cast %106 : vector<1x8x128xbf16> to vector<8x128xbf16>
    %108 = vector.shape_cast %104 : vector<8x128xbf16> to vector<1x8x128xbf16>
    tpu.vector_store %arg5[%105, %c0_42, %c0_43], %108 {strides = array<i32>} : memref<8x8x128xbf16, #tpu.memory_space<vmem>>, vector<1x8x128xbf16>,
    %c8_i32 = arith.constant 8 : i32
    %c0_44 = arith.constant 0 : index
    %c0_45 = arith.constant 0 : index
    %109 = vector.load %arg7[%c0_44, %c0_45] : memref<8x128xf32, #tpu.memory_space<vmem>>, vector<8x128xf32>
    tpu.vector_store %arg7[%c0_44, %c0_45], %103 {strides = array<i32>} : memref<8x128xf32, #tpu.memory_space<vmem>>, vector<8x128xf32>,
    %c0_46 = arith.constant 0 : index
    %c0_47 = arith.constant 0 : index
    %110 = vector.load %arg6[%c0_46, %c0_47] : memref<8x128xf32, #tpu.memory_space<vmem>>, vector<8x128xf32>
    tpu.vector_store %arg6[%c0_46, %c0_47], %103 {strides = array<i32>} : memref<8x128xf32, #tpu.memory_space<vmem>>, vector<8x128xf32>,
    return
  }
  func.func @transform_0(%arg0: i32, %arg1: i32) -> (i32, i32, i32) {
    %c0_i32 = arith.constant 0 : i32
    %c0_i32_0 = arith.constant 0 : i32
    return %arg1, %arg0, %c0_i32 : i32, i32, i32
  }
  func.func @transform_1(%arg0: i32, %arg1: i32) -> (i32, i32) {
    %c0_i32 = arith.constant 0 : i32
    %c0_i32_0 = arith.constant 0 : i32
    return %arg0, %c0_i32 : i32, i32
  }
  func.func @transform_2(%arg0: i32, %arg1: i32) -> (i32, i32) {
    %c0_i32 = arith.constant 0 : i32
    %c0_i32_0 = arith.constant 0 : i32
    %c0_i32_1 = arith.constant 0 : i32
    return %c0_i32, %c0_i32_0 : i32, i32
  }
  func.func @transform_3(%arg0: i32, %arg1: i32) -> (i32, i32, i32) {
    %c0_i32 = arith.constant 0 : i32
    %c0_i32_0 = arith.constant 0 : i32
    return %arg1, %arg0, %c0_i32 : i32, i32, i32
  }
  func.func @transform_4(%arg0: i32, %arg1: i32) -> (i32, i32) {
    %c0_i32 = arith.constant 0 : i32
    %c0_i32_0 = arith.constant 0 : i32
    return %arg0, %c0_i32 : i32, i32
  }
}

</mosaic_0001>

<llo_original>
// kernel: rnn_model_forward.3
$region0: #{rnn_model_forward.3}
  #allocation0 [shape = 'u32[]', space=smem, size = 0x4, offset = 0x4, fixed_abs, tag = 'smem constant byte address 0x4 - core index']
  #allocation1 [shape = 'u32[144,128]{1,0:T(1,128)}', space=vmem, size = 0x12000, scoped, tag = 'internal scratch']
  %s0 = inlined_call_operand.vmem [shape: bf16[64,128], index: 0, kind: input, shape index: {}]
  %s1 = inlined_call_operand.vmem [shape: bf16[128,128], index: 1, kind: input, shape index: {}]
  %s2 = inlined_call_operand.vmem [shape: f32[1,128], index: 2, kind: input, shape index: {}]
  %s3 = inlined_call_operand.vmem [shape: f32[64,128], index: 3, kind: output, shape index: {}]
  %s4 = sld [smem:[#allocation0]]
  $region22: #{rnn_model_forward.3} parent=0
    _
  %s6 = ssub.s32 1, %s4
  %s7 = scalar_select 0, %s6, %s4
  // Predicated region
  $region2: #{rnn_model_forward.3} parent=0 // pred_check
    _
  $region3: #{rnn_model_forward.3} parent=0 // pred_check_branch
    %9 = sbr.rel (0) target = $region5
  $region4: #{rnn_model_forward.3} parent=0 // pred_region
    _
  $region5: #{rnn_model_forward.3} parent=0 // pred_fallthru
    _
  // Predicated region
  $region6: #{rnn_model_forward.3} parent=0 // pred_check
    _
  $region7: #{rnn_model_forward.3} parent=0 // pred_check_branch
    %11 = sbr.rel (0) target = $region9
  $region8: #{rnn_model_forward.3} parent=0 // pred_region
    _
  $region9: #{rnn_model_forward.3} parent=0 // pred_fallthru
    _
  // Predicated region
  $region10: #{rnn_model_forward.3} parent=0 // pred_check
    _
  $region11: #{rnn_model_forward.3} parent=0 // pred_check_branch
    %13 = sbr.rel (0) target = $region13
  $region12: #{rnn_model_forward.3} parent=0 // pred_region
    _
  $region13: #{rnn_model_forward.3} parent=0 // pred_fallthru
    _
  %v15 = vld [vmem:[%s0] sm:$0xf]
  %v16 = vld [vmem:[%s0 + $0x4] sm:$0xf]
  %v17 = vld [vmem:[%s0 + $0x8] sm:$0xf]
  %v18 = vld [vmem:[%s0 + $0xc] sm:$0xf]
  %v19 = vld [vmem:[%s0 + $0x10] sm:$0xf]
  %v20 = vld [vmem:[%s0 + $0x14] sm:$0xf]
  %v21 = vld [vmem:[%s0 + $0x18] sm:$0xf]
  %v22 = vld [vmem:[%s0 + $0x1c] sm:$0xf]
  %v23 = vld [vmem:[%s1] sm:$0xf]
  %v24 = vld [vmem:[%s1 + $0x4] sm:$0xf]
  %v25 = vld [vmem:[%s1 + $0x8] sm:$0xf]
  %v26 = vld [vmem:[%s1 + $0xc] sm:$0xf]
  %v27 = vld [vmem:[%s1 + $0x10] sm:$0xf]
  %v28 = vld [vmem:[%s1 + $0x14] sm:$0xf]
  %v29 = vld [vmem:[%s1 + $0x18] sm:$0xf]
  %v30 = vld [vmem:[%s1 + $0x1c] sm:$0xf]
  %v31 = vld [vmem:[%s1 + $0x20] sm:$0xf]
  %v32 = vld [vmem:[%s1 + $0x24] sm:$0xf]
  %v33 = vld [vmem:[%s1 + $0x28] sm:$0xf]
  %v34 = vld [vmem:[%s1 + $0x2c] sm:$0xf]
  %v35 = vld [vmem:[%s1 + $0x30] sm:$0xf]
  %v36 = vld [vmem:[%s1 + $0x34] sm:$0xf]
  %v37 = vld [vmem:[%s1 + $0x38] sm:$0xf]
  %v38 = vld [vmem:[%s1 + $0x3c] sm:$0xf]
  %v39 = vld [vmem:[%s2] sm:$0x1]
  %v41 = vlaneseq
  %v42 = vshrl.u32 %v41, 7
  %v43 = vsub.s32 0, %v42
  %v44 = vrot.slane %v39, %v43
  %v54 = vunpack.c.l.b16 %v15
  %v55 = vunpack.c.l.b16 %v16
  %v56 = vunpack.c.l.b16 %v17
  %v57 = vunpack.c.l.b16 %v18
  %v58 = vunpack.c.l.b16 %v19
  %v59 = vunpack.c.l.b16 %v20
  %v60 = vunpack.c.l.b16 %v21
  %v61 = vunpack.c.l.b16 %v22
  %v62 = vpack.c.b16 %v55, %v54
  %v63 = vpack.c.b16 %v57, %v56
  %v64 = vpack.c.b16 %v59, %v58
  %v65 = vpack.c.b16 %v61, %v60
  %v86 = vunpack.c.l.b16 %v23
  %v87 = vunpack.c.l.b16 %v24
  %v88 = vunpack.c.l.b16 %v25
  %v89 = vunpack.c.l.b16 %v26
  %v90 = vunpack.c.l.b16 %v27
  %v91 = vunpack.c.l.b16 %v28
  %v92 = vunpack.c.l.b16 %v29
  %v93 = vunpack.c.l.b16 %v30
  %v94 = vunpack.c.l.b16 %v31
  %v95 = vunpack.c.l.b16 %v32
  %v96 = vunpack.c.l.b16 %v33
  %v97 = vunpack.c.l.b16 %v34
  %v98 = vunpack.c.l.b16 %v35
  %v99 = vunpack.c.l.b16 %v36
  %v100 = vunpack.c.l.b16 %v37
  %v101 = vunpack.c.l.b16 %v38
  %v102 = vpack.c.b16 %v87, %v86
  %v103 = vpack.c.b16 %v89, %v88
  %v104 = vpack.c.b16 %v91, %v90
  %v105 = vpack.c.b16 %v93, %v92
  %v106 = vpack.c.b16 %v95, %v94
  %v107 = vpack.c.b16 %v97, %v96
  %v108 = vpack.c.b16 %v99, %v98
  %v109 = vpack.c.b16 %v101, %v100
  %118 = vmatprep.subr.bf16.mxu0 0
  %119 = vmatpush1.bf16.msra.mxu0 %v109
  %120 = vmatprep.subr.bf16.mxu0 0
  %121 = vmatpush1.bf16.msra.mxu0 %v108
  %122 = vmatprep.subr.bf16.mxu0 0
  %123 = vmatpush1.bf16.msra.mxu0 %v107
  %124 = vmatprep.subr.bf16.mxu0 0
  %125 = vmatpush1.bf16.msra.mxu0 %v106
  %126 = vmatprep.subr.bf16.mxu0 0
  %127 = vmatpush1.bf16.msra.mxu0 %v105
  %128 = vmatprep.subr.bf16.mxu0 0
  %129 = vmatpush1.bf16.msra.mxu0 %v104
  %130 = vmatprep.subr.bf16.mxu0 0
  %131 = vmatpush1.bf16.msra.mxu0 %v103
  %132 = vmatprep.subr.bf16.mxu0 0
  %133 = vmatpush1.bf16.msra.mxu0 %v102
  %134 = vmatprep.subr.bf16.mxu0 0
  %135 = vmatpush2.bf16.msra.mxu0 0
  %136 = vmatprep.subr.bf16.mxu0 0
  %137 = vmatpush2.bf16.msra.mxu0 0
  %138 = vmatprep.subr.bf16.mxu0 0
  %139 = vmatpush2.bf16.msra.mxu0 0
  %140 = vmatprep.subr.bf16.mxu0 0
  %141 = vmatpush2.bf16.msra.mxu0 0
  %142 = vmatprep.subr.bf16.mxu0 0
  %143 = vmatpush2.bf16.msra.mxu0 0
  %144 = vmatprep.subr.bf16.mxu0 0
  %145 = vmatpush2.bf16.msra.mxu0 0
  %146 = vmatprep.subr.bf16.mxu0 0
  %147 = vmatpush2.bf16.msra.mxu0 0
  %148 = vmatprep.subr.bf16.mxu0 0
  %149 = vmatpush2.bf16.msra.mxu0 0
  %150 = vmatprep.mubr.bf16.mxu0 0
  %151 = vmatmul.mubr.bf16.gmra.mxu0 %v62
  %v152 = vpop.f32.mrf.mxu0
  %v153 = vadd.f32 %v44, %v152
  %v154 = vpop.f32.mrf.mxu0
  %v155 = vpop.f32.mrf.mxu0
  %v156 = vadd.f32 %v44, %v155
  %v157 = vpop.f32.mrf.mxu0
  %158 = vmatprep.mubr.bf16.mxu0 0
  %159 = vmatmul.mubr.bf16.gmra.mxu0 %v63
  %v160 = vpop.f32.mrf.mxu0
  %v161 = vadd.f32 %v44, %v160
  %v162 = vpop.f32.mrf.mxu0
  %v163 = vpop.f32.mrf.mxu0
  %v164 = vadd.f32 %v44, %v163
  %v165 = vpop.f32.mrf.mxu0
  %166 = vmatprep.mubr.bf16.mxu0 0
  %167 = vmatmul.mubr.bf16.gmra.mxu0 %v64
  %v168 = vpop.f32.mrf.mxu0
  %v169 = vadd.f32 %v44, %v168
  %v170 = vpop.f32.mrf.mxu0
  %v171 = vpop.f32.mrf.mxu0
  %v172 = vadd.f32 %v44, %v171
  %v173 = vpop.f32.mrf.mxu0
  %174 = vmatprep.mubr.bf16.mxu0 0
  %175 = vmatmul.mubr.bf16.gmra.mxu0 %v65
  %v176 = vpop.f32.mrf.mxu0
  %v177 = vadd.f32 %v44, %v176
  %v178 = vpop.f32.mrf.mxu0
  %v179 = vpop.f32.mrf.mxu0
  %v180 = vadd.f32 %v44, %v179
  %v181 = vpop.f32.mrf.mxu0
  %182 = vdwg.mxu0
  %183 = vst [vmem:[%s3] sm:$0xff] %v153
  %184 = vst [vmem:[%s3 + $0x8] sm:$0xff] %v156
  %185 = vst [vmem:[%s3 + $0x10] sm:$0xff] %v161
  %186 = vst [vmem:[%s3 + $0x18] sm:$0xff] %v164
  %187 = vst [vmem:[%s3 + $0x20] sm:$0xff] %v169
  %188 = vst [vmem:[%s3 + $0x28] sm:$0xff] %v172
  %189 = vst [vmem:[%s3 + $0x30] sm:$0xff] %v177
  %190 = vst [vmem:[%s3 + $0x38] sm:$0xff] %v180
  // Predicated region
  $region14: #{rnn_model_forward.3} parent=0 // pred_check
    _
  $region15: #{rnn_model_forward.3} parent=0 // pred_check_branch
    %192 = sbr.rel (0) target = $region17
  $region16: #{rnn_model_forward.3} parent=0 // pred_region
    _
  $region17: #{rnn_model_forward.3} parent=0 // pred_fallthru
    _
  // Predicated region
  $region18: #{rnn_model_forward.3} parent=0 // pred_check
    _
  $region19: #{rnn_model_forward.3} parent=0 // pred_check_branch
    %194 = sbr.rel (0) target = $region21
  $region20: #{rnn_model_forward.3} parent=0 // pred_region
    _
  $region21: #{rnn_model_forward.3} parent=0 // pred_fallthru
    _

// kernel: rnn_model_forward.2
$region0: #{rnn_model_forward.2}
  #allocation0 [shape = 'u32[]', space=smem, size = 0x4, offset = 0x4, fixed_abs, tag = 'smem constant byte address 0x4 - core index']
  #allocation1 [shape = 'u32[144,128]{1,0:T(1,128)}', space=vmem, size = 0x12000, scoped, tag = 'internal scratch']
  #allocation2 [shape = 'f32[8,128]{1,0:T(8,128)}', space=vmem, size = 0x1000, scoped, tag = 'scratch operand']
  %s0 = inlined_call_operand.vmem [shape: bf16[8,8,128], index: 0, kind: input, shape index: {}]
  %s1 = inlined_call_operand.vmem [shape: f32[8,128], index: 1, kind: input, shape index: {}]
  %s2 = inlined_call_operand.vmem [shape: bf16[128,128], index: 2, kind: input, shape index: {}]
  %s3 = inlined_call_operand.vmem [shape: bf16[8,8,128], index: 3, kind: output, shape index: {0}]
  %s4 = inlined_call_operand.vmem [shape: f32[8,128], index: 4, kind: output, shape index: {1}]
  %5 = xla_tuple %s3, %s4
  %s6 = sld [smem:[#allocation0]]
  $region34: #{rnn_model_forward.2} parent=0
    _
  %s8 = ssub.s32 1, %s6
  %s9 = scalar_select 0, %s8, %s6
  // Predicated region
  $region2: #{rnn_model_forward.2} parent=0 // pred_check
    _
  $region3: #{rnn_model_forward.2} parent=0 // pred_check_branch
    %11 = sbr.rel (0) target = $region5
  $region4: #{rnn_model_forward.2} parent=0 // pred_region
    _
  $region5: #{rnn_model_forward.2} parent=0 // pred_fallthru
    _
  // Predicated region
  $region6: #{rnn_model_forward.2} parent=0 // pred_check
    _
  $region7: #{rnn_model_forward.2} parent=0 // pred_check_branch
    %13 = sbr.rel (0) target = $region9
  $region8: #{rnn_model_forward.2} parent=0 // pred_region
    _
  $region9: #{rnn_model_forward.2} parent=0 // pred_fallthru
    _
  // Predicated region
  $region10: #{rnn_model_forward.2} parent=0 // pred_check
    _
  $region11: #{rnn_model_forward.2} parent=0 // pred_check_branch
    %15 = sbr.rel (0) target = $region13
  $region12: #{rnn_model_forward.2} parent=0 // pred_region
    _
  $region13: #{rnn_model_forward.2} parent=0 // pred_fallthru
    _
  %p17 = scmp.eq.s32.totalorder 0, 0
  // Predicated region
  $region14: #{rnn_model_forward.2} parent=0 // pred_check
    %p18 = pneg %p17
  $region15: #{rnn_model_forward.2} parent=0 // pred_check_branch
    %20 = sbr.rel (%p18) target = $region17
  $region16: #{rnn_model_forward.2} parent=0 // pred_region
    %v21 = vld [vmem:[%s1] sm:$0xff]
    %22 = vst [vmem:[#allocation2] sm:$0xff] %v21
  $region17: #{rnn_model_forward.2} parent=0 // pred_fallthru
    _
  %v23 = vld [vmem:[%s2] sm:$0xf]
  %v24 = vld [vmem:[%s2 + $0x4] sm:$0xf]
  %v25 = vld [vmem:[%s2 + $0x8] sm:$0xf]
  %v26 = vld [vmem:[%s2 + $0xc] sm:$0xf]
  %v27 = vld [vmem:[%s2 + $0x10] sm:$0xf]
  %v28 = vld [vmem:[%s2 + $0x14] sm:$0xf]
  %v29 = vld [vmem:[%s2 + $0x18] sm:$0xf]
  %v30 = vld [vmem:[%s2 + $0x1c] sm:$0xf]
  %v31 = vld [vmem:[%s2 + $0x20] sm:$0xf]
  %v32 = vld [vmem:[%s2 + $0x24] sm:$0xf]
  %v33 = vld [vmem:[%s2 + $0x28] sm:$0xf]
  %v34 = vld [vmem:[%s2 + $0x2c] sm:$0xf]
  %v35 = vld [vmem:[%s2 + $0x30] sm:$0xf]
  %v36 = vld [vmem:[%s2 + $0x34] sm:$0xf]
  %v37 = vld [vmem:[%s2 + $0x38] sm:$0xf]
  %v38 = vld [vmem:[%s2 + $0x3c] sm:$0xf]
  %v39 = vld [vmem:[#allocation2] sm:$0xff]
  %v40 = vld [vmem:[%s0] sm:$0xf]
  %v41 = vunpack.c.l.bf16 %v40
  %v42 = vpack.c.bf16 %v39, %v39
  %v59 = vunpack.c.l.b16 %v23
  %v60 = vunpack.c.l.b16 %v24
  %v61 = vunpack.c.l.b16 %v25
  %v62 = vunpack.c.l.b16 %v26
  %v63 = vunpack.c.l.b16 %v27
  %v64 = vunpack.c.l.b16 %v28
  %v65 = vunpack.c.l.b16 %v29
  %v66 = vunpack.c.l.b16 %v30
  %v67 = vunpack.c.l.b16 %v31
  %v68 = vunpack.c.l.b16 %v32
  %v69 = vunpack.c.l.b16 %v33
  %v70 = vunpack.c.l.b16 %v34
  %v71 = vunpack.c.l.b16 %v35
  %v72 = vunpack.c.l.b16 %v36
  %v73 = vunpack.c.l.b16 %v37
  %v74 = vunpack.c.l.b16 %v38
  %v75 = vpack.c.b16 %v60, %v59
  %v76 = vpack.c.b16 %v62, %v61
  %v77 = vpack.c.b16 %v64, %v63
  %v78 = vpack.c.b16 %v66, %v65
  %v79 = vpack.c.b16 %v68, %v67
  %v80 = vpack.c.b16 %v70, %v69
  %v81 = vpack.c.b16 %v72, %v71
  %v82 = vpack.c.b16 %v74, %v73
  %91 = vmatprep.subr.bf16.mxu0 0
  %92 = vmatpush1.bf16.msra.mxu0 %v82
  %93 = vmatprep.subr.bf16.mxu0 0
  %94 = vmatpush1.bf16.msra.mxu0 %v81
  %95 = vmatprep.subr.bf16.mxu0 0
  %96 = vmatpush1.bf16.msra.mxu0 %v80
  %97 = vmatprep.subr.bf16.mxu0 0
  %98 = vmatpush1.bf16.msra.mxu0 %v79
  %99 = vmatprep.subr.bf16.mxu0 0
  %100 = vmatpush1.bf16.msra.mxu0 %v78
  %101 = vmatprep.subr.bf16.mxu0 0
  %102 = vmatpush1.bf16.msra.mxu0 %v77
  %103 = vmatprep.subr.bf16.mxu0 0
  %104 = vmatpush1.bf16.msra.mxu0 %v76
  %105 = vmatprep.subr.bf16.mxu0 0
  %106 = vmatpush1.bf16.msra.mxu0 %v75
  %107 = vmatprep.subr.bf16.mxu0 0
  %108 = vmatpush2.bf16.msra.mxu0 0
  %109 = vmatprep.subr.bf16.mxu0 0
  %110 = vmatpush2.bf16.msra.mxu0 0
  %111 = vmatprep.subr.bf16.mxu0 0
  %112 = vmatpush2.bf16.msra.mxu0 0
  %113 = vmatprep.subr.bf16.mxu0 0
  %114 = vmatpush2.bf16.msra.mxu0 0
  %115 = vmatprep.subr.bf16.mxu0 0
  %116 = vmatpush2.bf16.msra.mxu0 0
  %117 = vmatprep.subr.bf16.mxu0 0
  %118 = vmatpush2.bf16.msra.mxu0 0
  %119 = vmatprep.subr.bf16.mxu0 0
  %120 = vmatpush2.bf16.msra.mxu0 0
  %121 = vmatprep.subr.bf16.mxu0 0
  %122 = vmatpush2.bf16.msra.mxu0 0
  %123 = vmatprep.mubr.bf16.mxu0 0
  %124 = vmatmul.mubr.bf16.gmra.mxu0 %v42
  %v125 = vpop.f32.mrf.mxu0
  %v126 = vadd.f32 0.0, %v125
  %v127 = vpop.f32.mrf.mxu0
  %v128 = vpop.f32.mrf.mxu0
  %v129 = vpop.f32.mrf.mxu0
  %130 = vdwg.mxu0
  %v131 = vadd.f32 %v41, %v126
  %v132 = vtanh.pop %v131
  %v133 = vpack.c.bf16 %v132, %v132
  %134 = vst [vmem:[%s3] sm:$0xf] %v133
  %s135 = scalar_lea.vmem %s0, 4
  %v136 = vld [vmem:[%s135] sm:$0xf]
  %v137 = vunpack.c.l.bf16 %v136
  %138 = vmatprep.subr.bf16.mxu0 0
  %139 = vmatpush1.bf16.msra.mxu0 %v82
  %140 = vmatprep.subr.bf16.mxu0 0
  %141 = vmatpush1.bf16.msra.mxu0 %v81
  %142 = vmatprep.subr.bf16.mxu0 0
  %143 = vmatpush1.bf16.msra.mxu0 %v80
  %144 = vmatprep.subr.bf16.mxu0 0
  %145 = vmatpush1.bf16.msra.mxu0 %v79
  %146 = vmatprep.subr.bf16.mxu0 0
  %147 = vmatpush1.bf16.msra.mxu0 %v78
  %148 = vmatprep.subr.bf16.mxu0 0
  %149 = vmatpush1.bf16.msra.mxu0 %v77
  %150 = vmatprep.subr.bf16.mxu0 0
  %151 = vmatpush1.bf16.msra.mxu0 %v76
  %152 = vmatprep.subr.bf16.mxu0 0
  %153 = vmatpush1.bf16.msra.mxu0 %v75
  %154 = vmatprep.subr.bf16.mxu0 0
  %155 = vmatpush2.bf16.msra.mxu0 0
  %156 = vmatprep.subr.bf16.mxu0 0
  %157 = vmatpush2.bf16.msra.mxu0 0
  %158 = vmatprep.subr.bf16.mxu0 0
  %159 = vmatpush2.bf16.msra.mxu0 0
  %160 = vmatprep.subr.bf16.mxu0 0
  %161 = vmatpush2.bf16.msra.mxu0 0
  %162 = vmatprep.subr.bf16.mxu0 0
  %163 = vmatpush2.bf16.msra.mxu0 0
  %164 = vmatprep.subr.bf16.mxu0 0
  %165 = vmatpush2.bf16.msra.mxu0 0
  %166 = vmatprep.subr.bf16.mxu0 0
  %167 = vmatpush2.bf16.msra.mxu0 0
  %168 = vmatprep.subr.bf16.mxu0 0
  %169 = vmatpush2.bf16.msra.mxu0 0
  %170 = vmatprep.mubr.bf16.mxu0 0
  %171 = vmatmul.mubr.bf16.gmra.mxu0 %v133
  %v172 = vpop.f32.mrf.mxu0
  %v173 = vadd.f32 0.0, %v172
  %v174 = vpop.f32.mrf.mxu0
  %v175 = vpop.f32.mrf.mxu0
  %v176 = vpop.f32.mrf.mxu0
  %177 = vdwg.mxu0
  %v178 = vadd.f32 %v137, %v173
  %v179 = vtanh.pop %v178
  %v180 = vpack.c.bf16 %v179, %v179
  %s181 = scalar_lea.vmem %s3, 4
  %182 = vst [vmem:[%s181] sm:$0xf] %v180
  %s183 = scalar_lea.vmem %s0, 8
  %v184 = vld [vmem:[%s183] sm:$0xf]
  %v185 = vunpack.c.l.bf16 %v184
  %186 = vmatprep.subr.bf16.mxu0 0
  %187 = vmatpush1.bf16.msra.mxu0 %v82
  %188 = vmatprep.subr.bf16.mxu0 0
  %189 = vmatpush1.bf16.msra.mxu0 %v81
  %190 = vmatprep.subr.bf16.mxu0 0
  %191 = vmatpush1.bf16.msra.mxu0 %v80
  %192 = vmatprep.subr.bf16.mxu0 0
  %193 = vmatpush1.bf16.msra.mxu0 %v79
  %194 = vmatprep.subr.bf16.mxu0 0
  %195 = vmatpush1.bf16.msra.mxu0 %v78
  %196 = vmatprep.subr.bf16.mxu0 0
  %197 = vmatpush1.bf16.msra.mxu0 %v77
  %198 = vmatprep.subr.bf16.mxu0 0
  %199 = vmatpush1.bf16.msra.mxu0 %v76
  %200 = vmatprep.subr.bf16.mxu0 0
  %201 = vmatpush1.bf16.msra.mxu0 %v75
  %202 = vmatprep.subr.bf16.mxu0 0
  %203 = vmatpush2.bf16.msra.mxu0 0
  %204 = vmatprep.subr.bf16.mxu0 0
  %205 = vmatpush2.bf16.msra.mxu0 0
  %206 = vmatprep.subr.bf16.mxu0 0
  %207 = vmatpush2.bf16.msra.mxu0 0
  %208 = vmatprep.subr.bf16.mxu0 0
  %209 = vmatpush2.bf16.msra.mxu0 0
  %210 = vmatprep.subr.bf16.mxu0 0
  %211 = vmatpush2.bf16.msra.mxu0 0
  %212 = vmatprep.subr.bf16.mxu0 0
  %213 = vmatpush2.bf16.msra.mxu0 0
  %214 = vmatprep.subr.bf16.mxu0 0
  %215 = vmatpush2.bf16.msra.mxu0 0
  %216 = vmatprep.subr.bf16.mxu0 0
  %217 = vmatpush2.bf16.msra.mxu0 0
  %218 = vmatprep.mubr.bf16.mxu0 0
  %219 = vmatmul.mubr.bf16.gmra.mxu0 %v180
  %v220 = vpop.f32.mrf.mxu0
  %v221 = vadd.f32 0.0, %v220
  %v222 = vpop.f32.mrf.mxu0
  %v223 = vpop.f32.mrf.mxu0
  %v224 = vpop.f32.mrf.mxu0
  %225 = vdwg.mxu0
  %v226 = vadd.f32 %v185, %v221
  %v227 = vtanh.pop %v226
  %v228 = vpack.c.bf16 %v227, %v227
  %s229 = scalar_lea.vmem %s3, 8
  %230 = vst [vmem:[%s229] sm:$0xf] %v228
  %s231 = scalar_lea.vmem %s0, 12
  %v232 = vld [vmem:[%s231] sm:$0xf]
  %v233 = vunpack.c.l.bf16 %v232
  %234 = vmatprep.subr.bf16.mxu0 0
  %235 = vmatpush1.bf16.msra.mxu0 %v82
  %236 = vmatprep.subr.bf16.mxu0 0
  %237 = vmatpush1.bf16.msra.mxu0 %v81
  %238 = vmatprep.subr.bf16.mxu0 0
  %239 = vmatpush1.bf16.msra.mxu0 %v80
  %240 = vmatprep.subr.bf16.mxu0 0
  %241 = vmatpush1.bf16.msra.mxu0 %v79
  %242 = vmatprep.subr.bf16.mxu0 0
  %243 = vmatpush1.bf16.msra.mxu0 %v78
  %244 = vmatprep.subr.bf16.mxu0 0
  %245 = vmatpush1.bf16.msra.mxu0 %v77
  %246 = vmatprep.subr.bf16.mxu0 0
  %247 = vmatpush1.bf16.msra.mxu0 %v76
  %248 = vmatprep.subr.bf16.mxu0 0
  %249 = vmatpush1.bf16.msra.mxu0 %v75
  %250 = vmatprep.subr.bf16.mxu0 0
  %251 = vmatpush2.bf16.msra.mxu0 0
  %252 = vmatprep.subr.bf16.mxu0 0
  %253 = vmatpush2.bf16.msra.mxu0 0
  %254 = vmatprep.subr.bf16.mxu0 0
  %255 = vmatpush2.bf16.msra.mxu0 0
  %256 = vmatprep.subr.bf16.mxu0 0
  %257 = vmatpush2.bf16.msra.mxu0 0
  %258 = vmatprep.subr.bf16.mxu0 0
  %259 = vmatpush2.bf16.msra.mxu0 0
  %260 = vmatprep.subr.bf16.mxu0 0
  %261 = vmatpush2.bf16.msra.mxu0 0
  %262 = vmatprep.subr.bf16.mxu0 0
  %263 = vmatpush2.bf16.msra.mxu0 0
  %264 = vmatprep.subr.bf16.mxu0 0
  %265 = vmatpush2.bf16.msra.mxu0 0
  %266 = vmatprep.mubr.bf16.mxu0 0
  %267 = vmatmul.mubr.bf16.gmra.mxu0 %v228
  %v268 = vpop.f32.mrf.mxu0
  %v269 = vadd.f32 0.0, %v268
  %v270 = vpop.f32.mrf.mxu0
  %v271 = vpop.f32.mrf.mxu0
  %v272 = vpop.f32.mrf.mxu0
  %273 = vdwg.mxu0
  %v274 = vadd.f32 %v233, %v269
  %v275 = vtanh.pop %v274
  %v276 = vpack.c.bf16 %v275, %v275
  %s277 = scalar_lea.vmem %s3, 12
  %278 = vst [vmem:[%s277] sm:$0xf] %v276
  %s279 = scalar_lea.vmem %s0, 16
  %v280 = vld [vmem:[%s279] sm:$0xf]
  %v281 = vunpack.c.l.bf16 %v280
  %282 = vmatprep.subr.bf16.mxu0 0
  %283 = vmatpush1.bf16.msra.mxu0 %v82
  %284 = vmatprep.subr.bf16.mxu0 0
  %285 = vmatpush1.bf16.msra.mxu0 %v81
  %286 = vmatprep.subr.bf16.mxu0 0
  %287 = vmatpush1.bf16.msra.mxu0 %v80
  %288 = vmatprep.subr.bf16.mxu0 0
  %289 = vmatpush1.bf16.msra.mxu0 %v79
  %290 = vmatprep.subr.bf16.mxu0 0
  %291 = vmatpush1.bf16.msra.mxu0 %v78
  %292 = vmatprep.subr.bf16.mxu0 0
  %293 = vmatpush1.bf16.msra.mxu0 %v77
  %294 = vmatprep.subr.bf16.mxu0 0
  %295 = vmatpush1.bf16.msra.mxu0 %v76
  %296 = vmatprep.subr.bf16.mxu0 0
  %297 = vmatpush1.bf16.msra.mxu0 %v75
  %298 = vmatprep.subr.bf16.mxu0 0
  %299 = vmatpush2.bf16.msra.mxu0 0
  %300 = vmatprep.subr.bf16.mxu0 0
  %301 = vmatpush2.bf16.msra.mxu0 0
  %302 = vmatprep.subr.bf16.mxu0 0
  %303 = vmatpush2.bf16.msra.mxu0 0
  %304 = vmatprep.subr.bf16.mxu0 0
  %305 = vmatpush2.bf16.msra.mxu0 0
  %306 = vmatprep.subr.bf16.mxu0 0
  %307 = vmatpush2.bf16.msra.mxu0 0
  %308 = vmatprep.subr.bf16.mxu0 0
  %309 = vmatpush2.bf16.msra.mxu0 0
  %310 = vmatprep.subr.bf16.mxu0 0
  %311 = vmatpush2.bf16.msra.mxu0 0
  %312 = vmatprep.subr.bf16.mxu0 0
  %313 = vmatpush2.bf16.msra.mxu0 0
  %314 = vmatprep.mubr.bf16.mxu0 0
  %315 = vmatmul.mubr.bf16.gmra.mxu0 %v276
  %v316 = vpop.f32.mrf.mxu0
  %v317 = vadd.f32 0.0, %v316
  %v318 = vpop.f32.mrf.mxu0
  %v319 = vpop.f32.mrf.mxu0
  %v320 = vpop.f32.mrf.mxu0
  %321 = vdwg.mxu0
  %v322 = vadd.f32 %v281, %v317
  %v323 = vtanh.pop %v322
  %v324 = vpack.c.bf16 %v323, %v323
  %s325 = scalar_lea.vmem %s3, 16
  %326 = vst [vmem:[%s325] sm:$0xf] %v324
  %s327 = scalar_lea.vmem %s0, 20
  %v328 = vld [vmem:[%s327] sm:$0xf]
  %v329 = vunpack.c.l.bf16 %v328
  %330 = vmatprep.subr.bf16.mxu0 0
  %331 = vmatpush1.bf16.msra.mxu0 %v82
  %332 = vmatprep.subr.bf16.mxu0 0
  %333 = vmatpush1.bf16.msra.mxu0 %v81
  %334 = vmatprep.subr.bf16.mxu0 0
  %335 = vmatpush1.bf16.msra.mxu0 %v80
  %336 = vmatprep.subr.bf16.mxu0 0
  %337 = vmatpush1.bf16.msra.mxu0 %v79
  %338 = vmatprep.subr.bf16.mxu0 0
  %339 = vmatpush1.bf16.msra.mxu0 %v78
  %340 = vmatprep.subr.bf16.mxu0 0
  %341 = vmatpush1.bf16.msra.mxu0 %v77
  %342 = vmatprep.subr.bf16.mxu0 0
  %343 = vmatpush1.bf16.msra.mxu0 %v76
  %344 = vmatprep.subr.bf16.mxu0 0
  %345 = vmatpush1.bf16.msra.mxu0 %v75
  %346 = vmatprep.subr.bf16.mxu0 0
  %347 = vmatpush2.bf16.msra.mxu0 0
  %348 = vmatprep.subr.bf16.mxu0 0
  %349 = vmatpush2.bf16.msra.mxu0 0
  %350 = vmatprep.subr.bf16.mxu0 0
  %351 = vmatpush2.bf16.msra.mxu0 0
  %352 = vmatprep.subr.bf16.mxu0 0
  %353 = vmatpush2.bf16.msra.mxu0 0
  %354 = vmatprep.subr.bf16.mxu0 0
  %355 = vmatpush2.bf16.msra.mxu0 0
  %356 = vmatprep.subr.bf16.mxu0 0
  %357 = vmatpush2.bf16.msra.mxu0 0
  %358 = vmatprep.subr.bf16.mxu0 0
  %359 = vmatpush2.bf16.msra.mxu0 0
  %360 = vmatprep.subr.bf16.mxu0 0
  %361 = vmatpush2.bf16.msra.mxu0 0
  %362 = vmatprep.mubr.bf16.mxu0 0
  %363 = vmatmul.mubr.bf16.gmra.mxu0 %v324
  %v364 = vpop.f32.mrf.mxu0
  %v365 = vadd.f32 0.0, %v364
  %v366 = vpop.f32.mrf.mxu0
  %v367 = vpop.f32.mrf.mxu0
  %v368 = vpop.f32.mrf.mxu0
  %369 = vdwg.mxu0
  %v370 = vadd.f32 %v329, %v365
  %v371 = vtanh.pop %v370
  %v372 = vpack.c.bf16 %v371, %v371
  %s373 = scalar_lea.vmem %s3, 20
  %374 = vst [vmem:[%s373] sm:$0xf] %v372
  %s375 = scalar_lea.vmem %s0, 24
  %v376 = vld [vmem:[%s375] sm:$0xf]
  %v377 = vunpack.c.l.bf16 %v376
  %378 = vmatprep.subr.bf16.mxu0 0
  %379 = vmatpush1.bf16.msra.mxu0 %v82
  %380 = vmatprep.subr.bf16.mxu0 0
  %381 = vmatpush1.bf16.msra.mxu0 %v81
  %382 = vmatprep.subr.bf16.mxu0 0
  %383 = vmatpush1.bf16.msra.mxu0 %v80
  %384 = vmatprep.subr.bf16.mxu0 0
  %385 = vmatpush1.bf16.msra.mxu0 %v79
  %386 = vmatprep.subr.bf16.mxu0 0
  %387 = vmatpush1.bf16.msra.mxu0 %v78
  %388 = vmatprep.subr.bf16.mxu0 0
  %389 = vmatpush1.bf16.msra.mxu0 %v77
  %390 = vmatprep.subr.bf16.mxu0 0
  %391 = vmatpush1.bf16.msra.mxu0 %v76
  %392 = vmatprep.subr.bf16.mxu0 0
  %393 = vmatpush1.bf16.msra.mxu0 %v75
  %394 = vmatprep.subr.bf16.mxu0 0
  %395 = vmatpush2.bf16.msra.mxu0 0
  %396 = vmatprep.subr.bf16.mxu0 0
  %397 = vmatpush2.bf16.msra.mxu0 0
  %398 = vmatprep.subr.bf16.mxu0 0
  %399 = vmatpush2.bf16.msra.mxu0 0
  %400 = vmatprep.subr.bf16.mxu0 0
  %401 = vmatpush2.bf16.msra.mxu0 0
  %402 = vmatprep.subr.bf16.mxu0 0
  %403 = vmatpush2.bf16.msra.mxu0 0
  %404 = vmatprep.subr.bf16.mxu0 0
  %405 = vmatpush2.bf16.msra.mxu0 0
  %406 = vmatprep.subr.bf16.mxu0 0
  %407 = vmatpush2.bf16.msra.mxu0 0
  %408 = vmatprep.subr.bf16.mxu0 0
  %409 = vmatpush2.bf16.msra.mxu0 0
  %410 = vmatprep.mubr.bf16.mxu0 0
  %411 = vmatmul.mubr.bf16.gmra.mxu0 %v372
  %v412 = vpop.f32.mrf.mxu0
  %v413 = vadd.f32 0.0, %v412
  %v414 = vpop.f32.mrf.mxu0
  %v415 = vpop.f32.mrf.mxu0
  %v416 = vpop.f32.mrf.mxu0
  %417 = vdwg.mxu0
  %v418 = vadd.f32 %v377, %v413
  %v419 = vtanh.pop %v418
  %v420 = vpack.c.bf16 %v419, %v419
  %s421 = scalar_lea.vmem %s3, 24
  %422 = vst [vmem:[%s421] sm:$0xf] %v420
  %s423 = scalar_lea.vmem %s0, 28
  %v424 = vld [vmem:[%s423] sm:$0xf]
  %v425 = vunpack.c.l.bf16 %v424
  %426 = vmatprep.subr.bf16.mxu0 0
  %427 = vmatpush1.bf16.msra.mxu0 %v82
  %428 = vmatprep.subr.bf16.mxu0 0
  %429 = vmatpush1.bf16.msra.mxu0 %v81
  %430 = vmatprep.subr.bf16.mxu0 0
  %431 = vmatpush1.bf16.msra.mxu0 %v80
  %432 = vmatprep.subr.bf16.mxu0 0
  %433 = vmatpush1.bf16.msra.mxu0 %v79
  %434 = vmatprep.subr.bf16.mxu0 0
  %435 = vmatpush1.bf16.msra.mxu0 %v78
  %436 = vmatprep.subr.bf16.mxu0 0
  %437 = vmatpush1.bf16.msra.mxu0 %v77
  %438 = vmatprep.subr.bf16.mxu0 0
  %439 = vmatpush1.bf16.msra.mxu0 %v76
  %440 = vmatprep.subr.bf16.mxu0 0
  %441 = vmatpush1.bf16.msra.mxu0 %v75
  %442 = vmatprep.subr.bf16.mxu0 0
  %443 = vmatpush2.bf16.msra.mxu0 0
  %444 = vmatprep.subr.bf16.mxu0 0
  %445 = vmatpush2.bf16.msra.mxu0 0
  %446 = vmatprep.subr.bf16.mxu0 0
  %447 = vmatpush2.bf16.msra.mxu0 0
  %448 = vmatprep.subr.bf16.mxu0 0
  %449 = vmatpush2.bf16.msra.mxu0 0
  %450 = vmatprep.subr.bf16.mxu0 0
  %451 = vmatpush2.bf16.msra.mxu0 0
  %452 = vmatprep.subr.bf16.mxu0 0
  %453 = vmatpush2.bf16.msra.mxu0 0
  %454 = vmatprep.subr.bf16.mxu0 0
  %455 = vmatpush2.bf16.msra.mxu0 0
  %456 = vmatprep.subr.bf16.mxu0 0
  %457 = vmatpush2.bf16.msra.mxu0 0
  %458 = vmatprep.mubr.bf16.mxu0 0
  %459 = vmatmul.mubr.bf16.gmra.mxu0 %v420
  %v460 = vpop.f32.mrf.mxu0
  %v461 = vadd.f32 0.0, %v460
  %v462 = vpop.f32.mrf.mxu0
  %v463 = vpop.f32.mrf.mxu0
  %v464 = vpop.f32.mrf.mxu0
  %465 = vdwg.mxu0
  %v466 = vadd.f32 %v425, %v461
  %v467 = vtanh.pop %v466
  %v468 = vpack.c.bf16 %v467, %v467
  %s469 = scalar_lea.vmem %s3, 28
  %470 = vst [vmem:[%s469] sm:$0xf] %v468
  %471 = vst [vmem:[#allocation2] sm:$0xff] %v467
  %472 = vst [vmem:[%s4] sm:$0xff] %v467
  // Predicated region
  $region18: #{rnn_model_forward.2} parent=0 // pred_check
    _
  $region19: #{rnn_model_forward.2} parent=0 // pred_check_branch
    %474 = sbr.rel (0) target = $region21
  $region20: #{rnn_model_forward.2} parent=0 // pred_region
    _
  $region21: #{rnn_model_forward.2} parent=0 // pred_fallthru
    _
  // Predicated region
  $region22: #{rnn_model_forward.2} parent=0 // pred_check
    _
  $region23: #{rnn_model_forward.2} parent=0 // pred_check_branch
    %476 = sbr.rel (0) target = $region25
  $region24: #{rnn_model_forward.2} parent=0 // pred_region
    _
  $region25: #{rnn_model_forward.2} parent=0 // pred_fallthru
    _
  // Predicated region
  $region26: #{rnn_model_forward.2} parent=0 // pred_check
    _
  $region27: #{rnn_model_forward.2} parent=0 // pred_check_branch
    %478 = sbr.rel (0) target = $region29
  $region28: #{rnn_model_forward.2} parent=0 // pred_region
    _
  $region29: #{rnn_model_forward.2} parent=0 // pred_fallthru
    _
  // Predicated region
  $region30: #{rnn_model_forward.2} parent=0 // pred_check
    _
  $region31: #{rnn_model_forward.2} parent=0 // pred_check_branch
    %480 = sbr.rel (0) target = $region33
  $region32: #{rnn_model_forward.2} parent=0 // pred_region
    _
  $region33: #{rnn_model_forward.2} parent=0 // pred_fallthru
    _

</llo_original>
